<compile_context>
chip_gen: v5e
topology: v5e:2x2
jax: 0.10.0
libtpu: 0.0.40
codegen_flags: <defaults>
</compile_context>

<pallas_src>
import functools

import jax
import jax.numpy as jnp
from jax.experimental import pallas as pl
from jax.experimental.pallas import tpu as pltpu


def _round_up(n, m):
    return ((n + m - 1) // m) * m


# --------------------------------------------------------------------------
# Pallas kernel: fused FM + MLP + linear term + sigmoid (all constants folded).
# --------------------------------------------------------------------------
def dfm_kernel(
    x_ref,     # (TB, SW)        bf16: [raw embeddings | lin_sum+biases | 0-pad]
    wx_ref,    # (SW, FMp+H1p)   bf16: [blockdiag(W_i^T)*gate | gate/BN-folded W1^T]
    bx_ref,    # (1,  FMp+H1p)   f32 : [trans biases | BN-folded b1]
    fsum_ref,  # (FMp, E)        bf16: stacked identities -> sum over fields
    w2t_ref,   # (H1p, H2p)      bf16: BN2-folded MLP layer-2
    b2_ref,    # (1,  H2p)       f32
    w3_ref,    # (1,  H2p)       f32 : final layer as a row vector
    out_ref,   # (TB, 1)         f32
    *, fe, fmp,
):
    x = x_ref[...]                                                  # (TB, SW) bf16

    # one full-width MXU push feeds both the FM transform and MLP layer 1
    y = jnp.dot(x, wx_ref[...], preferred_element_type=jnp.float32) + bx_ref[...]
    t = y[:, :fmp]                                                  # (TB, FMp) f32
    z = jnp.maximum(y[:, fmp:], 0.0)                                # (TB, H1p) f32

    # FM: 0.5 * (|| sum_f t_f ||^2 - sum_f ||t_f||^2); field sum via identity stack
    sum_t = jnp.dot(t.astype(jnp.bfloat16), fsum_ref[...],
                    preferred_element_type=jnp.float32)             # (TB, E)
    fm = 0.5 * (jnp.sum(sum_t * sum_t, axis=-1, keepdims=True)
                - jnp.sum(t * t, axis=-1, keepdims=True))           # (TB, 1)

    # FeaturesLinear (+ lin bias + final MLP bias), packed as slab column `fe`
    lin = x[:, fe:fe + 1].astype(jnp.float32)                       # (TB, 1)

    # MLP layer 2 (BN folded) + final (H2 -> 1) layer as VPU multiply + lane reduce
    z2 = jnp.maximum(
        jnp.dot(z.astype(jnp.bfloat16), w2t_ref[...],
                preferred_element_type=jnp.float32) + b2_ref[...], 0.0)
    mlp = jnp.sum(z2 * w3_ref[...], axis=-1, keepdims=True)

    out_ref[...] = jax.nn.sigmoid(lin + fm + mlp)


# --------------------------------------------------------------------------
# Glue: gather + slab packing (bf16), then pallas_call over a 1-D batch grid.
# --------------------------------------------------------------------------
def _gather_slab(x_idx, kp):
    """(B, FE+1) bf16 slab: raw embeddings + pre-reduced linear term column."""
    B = x_idx.shape[0]
    FE = kp["FE"]
    idx = x_idx + kp["offsets"][None, :]                            # (B, F) global ids
    embed = kp["emb_table"][idx].reshape(B, FE)                     # bf16 gather
    lin = (jnp.sum(kp["lin_table"][idx][..., 0].astype(jnp.float32),
                   axis=-1, keepdims=True) + kp["lin_b3"])          # (B, 1) f32
    return jnp.concatenate([embed, lin.astype(jnp.bfloat16)], axis=1)


def dfm_forward(x_idx, kp, block_b=1024):
    """x_idx: int32 (B, F) field indices. Returns f32 (B,) probabilities."""
    B = x_idx.shape[0]
    FE, SW, FMp, E = kp["FE"], kp["SW"], kp["FMp"], kp["embed_dim"]
    H1p, H2p = kp["H1p"], kp["H2p"]
    NT = FMp + H1p

    slab = _gather_slab(x_idx, kp)                                  # (B, FE+1) bf16

    tb = _round_up(min(block_b, B), 16)                             # bf16 sublane tile
    Bp = _round_up(B, tb)
    nsteps = Bp // tb
    if nsteps > 1 and nsteps % 2 == 1:
        Bp += tb                                                    # even grid: both
        nsteps += 1                                                 # v7x TCs balanced
    slab = jnp.pad(slab, ((0, Bp - B), (0, SW - (FE + 1))))

    kernel = functools.partial(dfm_kernel, fe=FE, fmp=FMp)

    def const_spec(shape):
        return pl.BlockSpec(shape, lambda i: (0, 0))

    out = pl.pallas_call(
        kernel,
        out_shape=jax.ShapeDtypeStruct((Bp, 1), jnp.float32),
        grid=(nsteps,),
        in_specs=[
            pl.BlockSpec((tb, SW), lambda i: (i, 0)),   # embedding slab (batch-blocked)
            const_spec((SW, NT)),                       # merged x-consuming weight
            const_spec((1, NT)),                        # merged biases
            const_spec((FMp, E)),                       # field-sum matrix
            const_spec((H1p, H2p)),                     # MLP layer 2
            const_spec((1, H2p)),
            const_spec((1, H2p)),                       # final layer row
        ],
        out_specs=pl.BlockSpec((tb, 1), lambda i: (i, 0)),
        compiler_params=pltpu.CompilerParams(
            dimension_semantics=("parallel",),
            vmem_limit_bytes=32 * 1024 * 1024,
        ),
    )(slab, kp["wx"], kp["bx"], kp["fsum"], kp["w2t"], kp["b2"], kp["w3"])
    return out[:B, 0]


# --------------------------------------------------------------------------
# Parameter construction (raw, torch-layout) and offline fusion / folding.
# --------------------------------------------------------------------------
def make_raw_params(key, field_dims, embed_dim, mlp_dims):
    F, E = len(field_dims), embed_dim
    H1, H2 = mlp_dims
    total = sum(field_dims)

    offs, acc = [], 0
    for d in field_dims:
        offs.append(acc)
        acc += d
    offsets = jnp.array(offs, dtype=jnp.int32)

    ks = jax.random.split(key, 13)
    f32 = jnp.float32

    def bn(k, n):
        k1, k2, k3, k4 = jax.random.split(k, 4)
        gamma = 1.0 + 0.1 * jax.random.normal(k1, (n,), f32)
        beta = 0.1 * jax.random.normal(k2, (n,), f32)
        mean = 0.1 * jax.random.normal(k3, (n,), f32)
        var = 1.0 + 0.2 * jax.random.uniform(k4, (n,), f32)
        return jnp.stack([gamma, beta, mean, var], axis=0)          # (4, n)

    return dict(
        embed_dim=E,
        offsets=offsets,
        emb_table=0.1 * jax.random.normal(ks[0], (total, E), f32),
        lin_table=0.1 * jax.random.normal(ks[1], (total, 1), f32),
        lin_bias=jnp.array([[0.05]], f32),
        sparse_var=0.3 * jax.random.normal(ks[2], (F, E), f32),     # exercises the mask
        trans_w=0.2 * jax.random.normal(ks[3], (F, E, E), f32),     # torch Linear (out,in)
        trans_b=0.1 * jax.random.normal(ks[4], (F, E), f32),
        w1=0.15 * jax.random.normal(ks[5], (H1, F * E), f32),
        b1=0.1 * jax.random.normal(ks[6], (H1,), f32),
        w2=0.15 * jax.random.normal(ks[7], (H2, H1), f32),
        b2=0.1 * jax.random.normal(ks[8], (H2,), f32),
        w3=0.15 * jax.random.normal(ks[9], (1, H2), f32),
        b3=0.1 * jax.random.normal(ks[10], (1,), f32),
        bn1=bn(ks[11], H1),
        bn2=bn(ks[12], H2),
    )


def prepare_kernel_params(raw, eps=1e-5):
    """One-time offline fusion: fold the constant eval-mode sparse gate and the
    eval-mode BatchNorm stats into the weights, merge the two x-consuming
    matmuls into one 128/256-lane padded weight, pad everything to 128 lanes,
    and cast MXU operands to bf16."""
    F, E = raw["sparse_var"].shape
    FE = F * E
    SW = _round_up(FE + 1, 128)          # slab width: embeddings + lin column, padded
    FMp = _round_up(FE, 128)             # FM transform output width, padded
    H1 = raw["w1"].shape[0]
    H2 = raw["w2"].shape[0]
    H1p = _round_up(H1, 128)
    H2p = _round_up(H2, 128)
    f32 = jnp.float32
    bf16 = jnp.bfloat16

    # eval-mode sparse gate: sigmoid(sv*15), hard-masked at 0.001 (constant)
    sv = jax.nn.sigmoid(raw["sparse_var"] * 15.0)
    sv = jnp.where(sv > 0.001, sv, 0.0).reshape(FE).astype(f32)

    # block-diagonal per-field transform, rows pre-scaled by the gate:
    # (x * sv) @ blockdiag(W_i^T) == x @ (diag(sv) @ blockdiag(W_i^T))
    wbd = jnp.zeros((FE, FE), f32)
    for i in range(F):
        wbd = wbd.at[i * E:(i + 1) * E, i * E:(i + 1) * E].set(raw["trans_w"][i].T)
    wbd = wbd * sv[:, None]

    def bn_scale_shift(bn):
        gamma, beta, mean, var = bn
        scale = gamma * jax.lax.rsqrt(var + eps)
        return scale, beta - mean * scale

    s1, sh1 = bn_scale_shift(raw["bn1"])
    w1t = (raw["w1"].T * sv[:, None]) * s1[None, :]
    b1 = raw["b1"] * s1 + sh1
    s2, sh2 = bn_scale_shift(raw["bn2"])
    w2t = raw["w2"].T * s2[None, :]
    b2 = raw["b2"] * s2 + sh2

    # merged x-consuming weight: [ blockdiag transform (FMp cols) | MLP layer 1 ]
    wx = jnp.zeros((SW, FMp + H1p), f32)
    wx = wx.at[:FE, :FE].set(wbd)
    wx = wx.at[:FE, FMp:FMp + H1].set(w1t)
    bx = jnp.zeros((1, FMp + H1p), f32)
    bx = bx.at[0, :FE].set(raw["trans_b"].reshape(FE))
    bx = bx.at[0, FMp:FMp + H1].set(b1)

    # field-sum matrix: stacked identities, (B, FMp) @ S -> (B, E)
    fsum = jnp.zeros((FMp, E), f32).at[:FE, :].set(jnp.tile(jnp.eye(E, dtype=f32), (F, 1)))

    w2t_p = jnp.zeros((H1p, H2p), f32).at[:H1, :H2].set(w2t)
    b2_p = jnp.zeros((1, H2p), f32).at[0, :H2].set(b2)
    w3_p = jnp.zeros((1, H2p), f32).at[0, :H2].set(raw["w3"][0])

    return dict(
        embed_dim=E, FE=FE, SW=SW, FMp=FMp, H1p=H1p, H2p=H2p,
        offsets=raw["offsets"],
        emb_table=raw["emb_table"].astype(bf16),
        lin_table=raw["lin_table"],
        # FeaturesLinear bias + final MLP bias, both folded into the lin column
        lin_b3=(raw["lin_bias"].reshape(1, 1) + raw["b3"].reshape(1, 1)).astype(f32),
        wx=wx.astype(bf16), bx=bx,
        fsum=fsum.astype(bf16),
        w2t=w2t_p.astype(bf16), b2=b2_p, w3=w3_p,
    )


# --------------------------------------------------------------------------
# References.
# --------------------------------------------------------------------------
def dfm_reference(x_idx, raw):
    """Pure-JAX f32 mirror of the PyTorch eval-mode forward (unfused)."""
    F, E = raw["sparse_var"].shape
    eps = 1e-5

    idx = x_idx + raw["offsets"][None, :]
    embed = raw["emb_table"][idx]                        # (B, F, E)
    lin_vals = raw["lin_table"][idx][..., 0]             # (B, F)

    sv = jax.nn.sigmoid(raw["sparse_var"] * 15.0)
    sv = jnp.where(sv > 0.001, sv, 0.0)
    ex = embed * sv[None, :, :]

    t = jnp.stack(
        [ex[:, i, :] @ raw["trans_w"][i].T + raw["trans_b"][i] for i in range(F)],
        axis=1)                                          # (B, F, E)
    fm = 0.5 * jnp.sum(jnp.sum(t, axis=1) ** 2 - jnp.sum(t * t, axis=1),
                       axis=1, keepdims=True)

    lin = jnp.sum(lin_vals, axis=1, keepdims=True) + raw["lin_bias"].reshape(1, 1)

    h = ex.reshape(ex.shape[0], F * E)

    def bn(z, p):
        g, b, m, v = p
        return (z - m) / jnp.sqrt(v + eps) * g + b

    z = jnp.maximum(bn(h @ raw["w1"].T + raw["b1"], raw["bn1"]), 0.0)
    z = jnp.maximum(bn(z @ raw["w2"].T + raw["b2"], raw["bn2"]), 0.0)
    mlp = z @ raw["w3"].T + raw["b3"]

    return jax.nn.sigmoid(lin + fm + mlp)[:, 0]


def dfm_quantized_reference(x_idx, kp):
    """Pure-JAX mirror of the kernel's exact math (bf16 operands, f32 accum)."""
    FE, FMp, SW = kp["FE"], kp["FMp"], kp["SW"]
    slab = _gather_slab(x_idx, kp).astype(jnp.float32)   # bf16-quantized values
    x = jnp.pad(slab, ((0, 0), (0, SW - (FE + 1))))
    y = x @ kp["wx"].astype(jnp.float32) + kp["bx"]
    t = y[:, :FMp]
    z = jnp.maximum(y[:, FMp:], 0.0)
    sum_t = t.astype(jnp.bfloat16).astype(jnp.float32) @ kp["fsum"].astype(jnp.float32)
    fm = 0.5 * (jnp.sum(sum_t * sum_t, axis=-1, keepdims=True)
                - jnp.sum(t * t, axis=-1, keepdims=True))
    lin = x[:, FE:FE + 1]
    z2 = jnp.maximum(
        z.astype(jnp.bfloat16).astype(jnp.float32) @ kp["w2t"].astype(jnp.float32)
        + kp["b2"], 0.0)
    mlp = jnp.sum(z2 * kp["w3"], axis=-1, keepdims=True)
    return jax.nn.sigmoid(lin + fm + mlp)[:, 0]


# --------------------------------------------------------------------------
# Demo / verification.
# --------------------------------------------------------------------------
if __name__ == "__main__":
    field_dims = [10, 20, 30, 40]     # F = 4 fields
    embed_dim = 16
    mlp_dims = (32, 16)

    key = jax.random.PRNGKey(0)
    pkey, xkey1, xkey2 = jax.random.split(key, 3)
    raw = make_raw_params(pkey, field_dims, embed_dim, mlp_dims)
    kp = prepare_kernel_params(raw)

    def make_x(k, batch):
        ks = jax.random.split(k, len(field_dims))
        return jnp.stack([jax.random.randint(ks[i], (batch,), 0, d, dtype=jnp.int32)
                          for i, d in enumerate(field_dims)], axis=1)

    x_small = make_x(xkey1, 10)       # single padded block
    x_multi = make_x(xkey2, 37)       # multi-step grid + padding + even-grid bump

    out_small = jax.block_until_ready(dfm_forward(x_small, kp))
    out_multi = jax.block_until_ready(dfm_forward(x_multi, kp, block_b=16))

    ref_small = jax.block_until_ready(dfm_reference(x_small, raw))
    ref_multi = jax.block_until_ready(dfm_reference(x_multi, raw))
    q_small = jax.block_until_ready(dfm_quantized_reference(x_small, kp))
    q_multi = jax.block_until_ready(dfm_quantized_reference(x_multi, kp))

    assert out_small.shape == (10,) and out_multi.shape == (37,)
    assert bool(jnp.all(jnp.isfinite(out_small))) and bool(jnp.all(jnp.isfinite(out_multi)))
    # tight: kernel vs bf16-quantized pure-JAX mirror of the same fused math
    assert jnp.allclose(out_small, q_small, rtol=1e-3, atol=1e-4), (out_small, q_small)
    assert jnp.allclose(out_multi, q_multi, rtol=1e-3, atol=1e-4), (out_multi, q_multi)
    # loose: kernel vs full-f32 PyTorch eval-mode mirror (bf16 streaming drift)
    assert jnp.allclose(out_small, ref_small, atol=2e-2), (out_small, ref_small)
    assert jnp.allclose(out_multi, ref_multi, atol=2e-2), (out_multi, ref_multi)

    print("KERNEL_OK")
</pallas_src>

<mosaic_0001>
module attributes {stable_mosaic.version = 11 : i64} {
  func.func @dfm_kernel(%arg0: i32, %arg1: memref<16x128xbf16, #tpu.memory_space<vmem>>, %arg2: memref<128x256xbf16, #tpu.memory_space<vmem>>, %arg3: memref<1x256xf32, #tpu.memory_space<vmem>>, %arg4: memref<128x16xbf16, #tpu.memory_space<vmem>>, %arg5: memref<128x128xbf16, #tpu.memory_space<vmem>>, %arg6: memref<1x128xf32, #tpu.memory_space<vmem>>, %arg7: memref<1x128xf32, #tpu.memory_space<vmem>>, %arg8: memref<16x1xf32, #tpu.memory_space<vmem>>) attributes {dimension_semantics = [#tpu.dimension_semantics<parallel>], iteration_bounds = array<i64: 1>, scalar_prefetch = 0 : i64, scratch_operands = 0 : i64, tpu.core_type = #tpu.core_type<tc>, window_params = [{transform_indices = @transform_0, window_bounds = array<i64: 16, 128>}, {pipeline_mode = #tpu.pipeline_mode<synchronous>, transform_indices = @transform_1, window_bounds = array<i64: 128, 256>}, {pipeline_mode = #tpu.pipeline_mode<synchronous>, transform_indices = @transform_2, window_bounds = array<i64: 1, 256>}, {pipeline_mode = #tpu.pipeline_mode<synchronous>, transform_indices = @transform_3, window_bounds = array<i64: 128, 16>}, {pipeline_mode = #tpu.pipeline_mode<synchronous>, transform_indices = @transform_4, window_bounds = array<i64: 128, 128>}, {pipeline_mode = #tpu.pipeline_mode<synchronous>, transform_indices = @transform_5, window_bounds = array<i64: 1, 128>}, {pipeline_mode = #tpu.pipeline_mode<synchronous>, transform_indices = @transform_6, window_bounds = array<i64: 1, 128>}, {transform_indices = @transform_7, window_bounds = array<i64: 16, 1>}]} {
    %c0 = arith.constant 0 : index
    %c0_0 = arith.constant 0 : index
    %0 = vector.load %arg1[%c0, %c0_0] : memref<16x128xbf16, #tpu.memory_space<vmem>>, vector<16x128xbf16>
    %c0_1 = arith.constant 0 : index
    %c0_2 = arith.constant 0 : index
    %1 = vector.load %arg2[%c0_1, %c0_2] : memref<128x256xbf16, #tpu.memory_space<vmem>>, vector<128x256xbf16>
    %cst = arith.constant dense<0.000000e+00> : vector<16x256xf32>
    %2 = tpu.matmul %0, %1, %cst {dimension_numbers = #tpu.dot_dimension_numbers<[1], [0], [0], [1], [0, 0, 1, 1], [], []>} : vector<16x128xbf16>, vector<128x256xbf16>, vector<16x256xf32> -> vector<16x256xf32>
    %c0_3 = arith.constant 0 : index
    %c0_4 = arith.constant 0 : index
    %3 = vector.load %arg3[%c0_3, %c0_4] : memref<1x256xf32, #tpu.memory_space<vmem>>, vector<1x256xf32>
    %4 = vector.broadcast %3 : vector<1x256xf32> to vector<16x256xf32>
    %5 = arith.addf %2, %4 : vector<16x256xf32>
    %6 = vector.extract_strided_slice %5 {offsets = [0, 0], sizes = [16, 128], strides = [1, 1]} : vector<16x256xf32> to vector<16x128xf32>
    %7 = vector.extract_strided_slice %5 {offsets = [0, 128], sizes = [16, 128], strides = [1, 1]} : vector<16x256xf32> to vector<16x128xf32>
    %cst_5 = arith.constant 0.000000e+00 : f32
    %8 = vector.broadcast %cst_5 : f32 to vector<16x128xf32>
    %9 = arith.maximumf %7, %8 : vector<16x128xf32>
    %10 = arith.truncf %6 : vector<16x128xf32> to vector<16x128xbf16>
    %c0_6 = arith.constant 0 : index
    %c0_7 = arith.constant 0 : index
    %11 = vector.load %arg4[%c0_6, %c0_7] : memref<128x16xbf16, #tpu.memory_space<vmem>>, vector<128x16xbf16>
    %cst_8 = arith.constant dense<0.000000e+00> : vector<16x16xf32>
    %12 = tpu.matmul %10, %11, %cst_8 {dimension_numbers = #tpu.dot_dimension_numbers<[1], [0], [0], [1], [0, 0, 1, 1], [], []>} : vector<16x128xbf16>, vector<128x16xbf16>, vector<16x16xf32> -> vector<16x16xf32>
    %13 = arith.mulf %12, %12 : vector<16x16xf32>
    %cst_9 = arith.constant dense<0.000000e+00> : vector<16xf32>
    %14 = vector.multi_reduction <add>, %13, %cst_9 [1] : vector<16x16xf32> to vector<16xf32>
    %15 = vector.shape_cast %14 : vector<16xf32> to vector<16x1xf32>
    %16 = arith.mulf %6, %6 : vector<16x128xf32>
    %cst_10 = arith.constant dense<0.000000e+00> : vector<16xf32>
    %17 = vector.multi_reduction <add>, %16, %cst_10 [1] : vector<16x128xf32> to vector<16xf32>
    %18 = vector.shape_cast %17 : vector<16xf32> to vector<16x1xf32>
    %19 = arith.subf %15, %18 : vector<16x1xf32>
    %cst_11 = arith.constant 5.000000e-01 : f32
    %20 = vector.broadcast %cst_11 : f32 to vector<16x1xf32>
    %21 = arith.mulf %20, %19 : vector<16x1xf32>
    %22 = vector.extract_strided_slice %0 {offsets = [0, 64], sizes = [16, 1], strides = [1, 1]} : vector<16x128xbf16> to vector<16x1xbf16>
    %23 = arith.extf %22 : vector<16x1xbf16> to vector<16x1xf32>
    %24 = arith.truncf %9 : vector<16x128xf32> to vector<16x128xbf16>
    %c0_12 = arith.constant 0 : index
    %c0_13 = arith.constant 0 : index
    %25 = vector.load %arg5[%c0_12, %c0_13] : memref<128x128xbf16, #tpu.memory_space<vmem>>, vector<128x128xbf16>
    %cst_14 = arith.constant dense<0.000000e+00> : vector<16x128xf32>
    %26 = tpu.matmul %24, %25, %cst_14 {dimension_numbers = #tpu.dot_dimension_numbers<[1], [0], [0], [1], [0, 0, 1, 1], [], []>} : vector<16x128xbf16>, vector<128x128xbf16>, vector<16x128xf32> -> vector<16x128xf32>
    %c0_15 = arith.constant 0 : index
    %c0_16 = arith.constant 0 : index
    %27 = vector.load %arg6[%c0_15, %c0_16] : memref<1x128xf32, #tpu.memory_space<vmem>>, vector<1x128xf32>
    %28 = vector.broadcast %27 : vector<1x128xf32> to vector<16x128xf32>
    %29 = arith.addf %26, %28 : vector<16x128xf32>
    %cst_17 = arith.constant 0.000000e+00 : f32
    %30 = vector.broadcast %cst_17 : f32 to vector<16x128xf32>
    %31 = arith.maximumf %29, %30 : vector<16x128xf32>
    %c0_18 = arith.constant 0 : index
    %c0_19 = arith.constant 0 : index
    %32 = vector.load %arg7[%c0_18, %c0_19] : memref<1x128xf32, #tpu.memory_space<vmem>>, vector<1x128xf32>
    %33 = vector.broadcast %32 : vector<1x128xf32> to vector<16x128xf32>
    %34 = arith.mulf %31, %33 : vector<16x128xf32>
    %cst_20 = arith.constant dense<0.000000e+00> : vector<16xf32>
    %35 = vector.multi_reduction <add>, %34, %cst_20 [1] : vector<16x128xf32> to vector<16xf32>
    %36 = vector.shape_cast %35 : vector<16xf32> to vector<16x1xf32>
    %37 = arith.addf %23, %21 : vector<16x1xf32>
    %38 = arith.addf %37, %36 : vector<16x1xf32>
    %39 = arith.negf %38 : vector<16x1xf32>
    %40 = math.exp %39 : vector<16x1xf32>
    %cst_21 = arith.constant 1.000000e+00 : f32
    %41 = vector.broadcast %cst_21 : f32 to vector<16x1xf32>
    %42 = arith.addf %41, %40 : vector<16x1xf32>
    %43 = arith.divf %41, %42 : vector<16x1xf32>
    %c0_22 = arith.constant 0 : index
    %c0_23 = arith.constant 0 : index
    %44 = vector.load %arg8[%c0_22, %c0_23] : memref<16x1xf32, #tpu.memory_space<vmem>>, vector<16x1xf32>
    tpu.vector_store %arg8[%c0_22, %c0_23], %43 {strides = array<i32>} : memref<16x1xf32, #tpu.memory_space<vmem>>, vector<16x1xf32>,
    return
  }
  func.func @transform_0(%arg0: i32) -> (i32, i32) {
    %c0_i32 = arith.constant 0 : i32
    %c0_i32_0 = arith.constant 0 : i32
    return %arg0, %c0_i32 : i32, i32
  }
  func.func @transform_1(%arg0: i32) -> (i32, i32) {
    %c0_i32 = arith.constant 0 : i32
    %c0_i32_0 = arith.constant 0 : i32
    %c0_i32_1 = arith.constant 0 : i32
    return %c0_i32, %c0_i32_0 : i32, i32
  }
  func.func @transform_2(%arg0: i32) -> (i32, i32) {
    %c0_i32 = arith.constant 0 : i32
    %c0_i32_0 = arith.constant 0 : i32
    %c0_i32_1 = arith.constant 0 : i32
    return %c0_i32, %c0_i32_0 : i32, i32
  }
  func.func @transform_3(%arg0: i32) -> (i32, i32) {
    %c0_i32 = arith.constant 0 : i32
    %c0_i32_0 = arith.constant 0 : i32
    %c0_i32_1 = arith.constant 0 : i32
    return %c0_i32, %c0_i32_0 : i32, i32
  }
  func.func @transform_4(%arg0: i32) -> (i32, i32) {
    %c0_i32 = arith.constant 0 : i32
    %c0_i32_0 = arith.constant 0 : i32
    %c0_i32_1 = arith.constant 0 : i32
    return %c0_i32, %c0_i32_0 : i32, i32
  }
  func.func @transform_5(%arg0: i32) -> (i32, i32) {
    %c0_i32 = arith.constant 0 : i32
    %c0_i32_0 = arith.constant 0 : i32
    %c0_i32_1 = arith.constant 0 : i32
    return %c0_i32, %c0_i32_0 : i32, i32
  }
  func.func @transform_6(%arg0: i32) -> (i32, i32) {
    %c0_i32 = arith.constant 0 : i32
    %c0_i32_0 = arith.constant 0 : i32
    %c0_i32_1 = arith.constant 0 : i32
    return %c0_i32, %c0_i32_0 : i32, i32
  }
  func.func @transform_7(%arg0: i32) -> (i32, i32) {
    %c0_i32 = arith.constant 0 : i32
    %c0_i32_0 = arith.constant 0 : i32
    return %arg0, %c0_i32 : i32, i32
  }
}

</mosaic_0001>

<llo_original>
// kernel: tpu_custom_call.1
$region0: #{tpu_custom_call.1}
  #allocation0 [shape = 'u32[]', space=smem, size = 0x4, offset = 0x4, fixed_abs, tag = 'smem constant byte address 0x4 - core index']
  #allocation1 [shape = 'u32[72,128]{1,0:T(1,128)}', space=vmem, size = 0x9000, scoped, tag = 'internal scratch']
  %s0 = inlined_call_operand.vmem [shape: bf16[16,128], index: 0, kind: input, shape index: {}]
  %s1 = inlined_call_operand.hbm [shape: bf16[128,256], index: 1, kind: input, shape index: {}]
  %s2 = inlined_call_operand.vmem [shape: f32[1,256], index: 2, kind: input, shape index: {}]
  %s3 = inlined_call_operand.vmem [shape: bf16[128,16], index: 3, kind: input, shape index: {}]
  %s4 = inlined_call_operand.vmem [shape: bf16[128,128], index: 4, kind: input, shape index: {}]
  %s5 = inlined_call_operand.vmem [shape: f32[1,128], index: 5, kind: input, shape index: {}]
  %s6 = inlined_call_operand.vmem [shape: f32[1,128], index: 6, kind: input, shape index: {}]
  %s7 = inlined_call_operand.vmem [shape: f32[16,1], index: 7, kind: output, shape index: {}]
  %s8 = sld [smem:[#allocation0]]
  $region42: #{tpu_custom_call.1} parent=0
    _
  %s10 = ssub.s32 1, %s8
  %s11 = scalar_select 0, %s10, %s8
  $region1: #{tpu_custom_call.1} parent=0
    #allocation2 [shape = 'u8[65536]{0}', space=vmem, size = 0x10000, scoped, tag = 'input window, operand 1, single buffered']
    #allocation3 [shape = 's32[1]{0}', space=sflag, size = 0x4, scoped, tag = 'scoped memory for tpu_custom_call.1']
    %12 = vsyncpa [#allocation3], 0
    // Predicated region
    $region2: #{tpu_custom_call.1} parent=1 // pred_check
      _
    $region3: #{tpu_custom_call.1} parent=1 // pred_check_branch
      %14 = sbr.rel (0) target = $region5
    $region4: #{tpu_custom_call.1} parent=1 // pred_region
      _
    $region5: #{tpu_custom_call.1} parent=1 // pred_fallthru
      _
    // Predicated region
    $region6: #{tpu_custom_call.1} parent=1 // pred_check
      _
    $region7: #{tpu_custom_call.1} parent=1 // pred_check_branch
      %16 = sbr.rel (0) target = $region9
    $region8: #{tpu_custom_call.1} parent=1 // pred_region
      %18 = vsyncadd [#allocation3], 0
      %s19 = sshll.u32 %s1, 4
      %s20 = int_to_ptr.hbm [resolvable:$true] %s19
      %s21 = sshll.u32 [#allocation2], 4
      %s22 = int_to_ptr.vmem [resolvable:$true] %s21
      %27 = dma.hbm_to_vmem [thread:$0]  %s20, 2048, %s22, [#allocation3], 128, 128, 8
    $region9: #{tpu_custom_call.1} parent=1 // pred_fallthru
      _
    // Predicated region
    $region10: #{tpu_custom_call.1} parent=1 // pred_check
      _
    $region11: #{tpu_custom_call.1} parent=1 // pred_check_branch
      %29 = sbr.rel (0) target = $region13
    $region12: #{tpu_custom_call.1} parent=1 // pred_region
      _
    $region13: #{tpu_custom_call.1} parent=1 // pred_fallthru
      _
    // Predicated region
    $region14: #{tpu_custom_call.1} parent=1 // pred_check
      _
    $region15: #{tpu_custom_call.1} parent=1 // pred_check_branch
      %31 = sbr.rel (0) target = $region17
    $region16: #{tpu_custom_call.1} parent=1 // pred_region
      _
    $region17: #{tpu_custom_call.1} parent=1 // pred_fallthru
      _
    // Predicated region
    $region18: #{tpu_custom_call.1} parent=1 // pred_check
      _
    $region19: #{tpu_custom_call.1} parent=1 // pred_check_branch
      %33 = sbr.rel (0) target = $region21
    $region20: #{tpu_custom_call.1} parent=1 // pred_region
      _
    $region21: #{tpu_custom_call.1} parent=1 // pred_fallthru
      _
    // Predicated region
    $region22: #{tpu_custom_call.1} parent=1 // pred_check
      _
    $region23: #{tpu_custom_call.1} parent=1 // pred_check_branch
      %35 = sbr.rel (0) target = $region25
    $region24: #{tpu_custom_call.1} parent=1 // pred_region
      _
    $region25: #{tpu_custom_call.1} parent=1 // pred_fallthru
      _
    // Predicated region
    $region26: #{tpu_custom_call.1} parent=1 // pred_check
      _
    $region27: #{tpu_custom_call.1} parent=1 // pred_check_branch
      %37 = sbr.rel (0) target = $region29
    $region28: #{tpu_custom_call.1} parent=1 // pred_region
      _
    $region29: #{tpu_custom_call.1} parent=1 // pred_fallthru
      _
    // Predicated region
    $region30: #{tpu_custom_call.1} parent=1 // pred_check
      _
    $region31: #{tpu_custom_call.1} parent=1 // pred_check_branch
      %39 = sbr.rel (0) target = $region33
    $region32: #{tpu_custom_call.1} parent=1 // pred_region
      %41 = dma.done [#allocation3], 2048
    $region33: #{tpu_custom_call.1} parent=1 // pred_fallthru
      _
    %v42 = vld [vmem:[%s0] sm:$0xf]
    %v43 = vld [vmem:[%s0 + $0x4] sm:$0xf]
    %v44 = vld [vmem:[#allocation2] sm:$0xff]
    %v45 = vld [vmem:[#allocation2 + $0x8] sm:$0xff]
    %v46 = vld [vmem:[#allocation2 + $0x10] sm:$0xff]
    %v47 = vld [vmem:[#allocation2 + $0x18] sm:$0xff]
    %v48 = vld [vmem:[#allocation2 + $0x20] sm:$0xff]
    %v49 = vld [vmem:[#allocation2 + $0x28] sm:$0xff]
    %v50 = vld [vmem:[#allocation2 + $0x30] sm:$0xff]
    %v51 = vld [vmem:[#allocation2 + $0x38] sm:$0xff]
    %v52 = vld [vmem:[#allocation2 + $0x40] sm:$0xff]
    %v53 = vld [vmem:[#allocation2 + $0x48] sm:$0xff]
    %v54 = vld [vmem:[#allocation2 + $0x50] sm:$0xff]
    %v55 = vld [vmem:[#allocation2 + $0x58] sm:$0xff]
    %v56 = vld [vmem:[#allocation2 + $0x60] sm:$0xff]
    %v57 = vld [vmem:[#allocation2 + $0x68] sm:$0xff]
    %v58 = vld [vmem:[#allocation2 + $0x70] sm:$0xff]
    %v59 = vld [vmem:[#allocation2 + $0x78] sm:$0xff]
    %v60 = vld [vmem:[%s2] sm:$0x3]
    %v62 = vperm.slane %v60, 0
    %v63 = vperm.slane %v60, 1
    %v68 = vunpack.c.l.b16 %v42
    %v69 = vunpack.c.l.b16 %v43
    %v70 = vpack.c.b16 %v69, %v68
    %v88 = vunpack.c.l.b16 %v44
    %v89 = vunpack.c.h.b16 %v44
    %v90 = vunpack.c.l.b16 %v45
    %v91 = vunpack.c.h.b16 %v45
    %v92 = vunpack.c.l.b16 %v46
    %v93 = vunpack.c.h.b16 %v46
    %v94 = vunpack.c.l.b16 %v47
    %v95 = vunpack.c.h.b16 %v47
    %v96 = vunpack.c.l.b16 %v48
    %v97 = vunpack.c.h.b16 %v48
    %v98 = vunpack.c.l.b16 %v49
    %v99 = vunpack.c.h.b16 %v49
    %v100 = vunpack.c.l.b16 %v50
    %v101 = vunpack.c.h.b16 %v50
    %v102 = vunpack.c.l.b16 %v51
    %v103 = vunpack.c.h.b16 %v51
    %v104 = vunpack.c.l.b16 %v52
    %v105 = vunpack.c.h.b16 %v52
    %v106 = vunpack.c.l.b16 %v53
    %v107 = vunpack.c.h.b16 %v53
    %v108 = vunpack.c.l.b16 %v54
    %v109 = vunpack.c.h.b16 %v54
    %v110 = vunpack.c.l.b16 %v55
    %v111 = vunpack.c.h.b16 %v55
    %v112 = vunpack.c.l.b16 %v56
    %v113 = vunpack.c.h.b16 %v56
    %v114 = vunpack.c.l.b16 %v57
    %v115 = vunpack.c.h.b16 %v57
    %v116 = vunpack.c.l.b16 %v58
    %v117 = vunpack.c.h.b16 %v58
    %v118 = vunpack.c.l.b16 %v59
    %v119 = vunpack.c.h.b16 %v59
    %v120 = vpack.c.b16 %v90, %v88
    %v121 = vpack.c.b16 %v91, %v89
    %v122 = vpack.c.b16 %v94, %v92
    %v123 = vpack.c.b16 %v95, %v93
    %v124 = vpack.c.b16 %v98, %v96
    %v125 = vpack.c.b16 %v99, %v97
    %v126 = vpack.c.b16 %v102, %v100
    %v127 = vpack.c.b16 %v103, %v101
    %v128 = vpack.c.b16 %v106, %v104
    %v129 = vpack.c.b16 %v107, %v105
    %v130 = vpack.c.b16 %v110, %v108
    %v131 = vpack.c.b16 %v111, %v109
    %v132 = vpack.c.b16 %v114, %v112
    %v133 = vpack.c.b16 %v115, %v113
    %v134 = vpack.c.b16 %v118, %v116
    %v135 = vpack.c.b16 %v119, %v117
    %152 = vmatpush.bf16.msra.mxu0 %v134
    %153 = vmatpush.bf16.msra.mxu0 %v132
    %154 = vmatpush.bf16.msra.mxu0 %v130
    %155 = vmatpush.bf16.msra.mxu0 %v128
    %156 = vmatpush.bf16.msra.mxu0 %v126
    %157 = vmatpush.bf16.msra.mxu0 %v124
    %158 = vmatpush.bf16.msra.mxu0 %v122
    %159 = vmatpush.bf16.msra.mxu0 %v120
    %160 = vmatmul.bf16.gmra.mxu0 %v70
    %v161 = vpop.f32.mrf.mxu0
    %v162 = vadd.f32 %v62, %v161
    %v163 = vpop.f32.mrf.mxu0
    %v164 = vadd.f32 %v62, %v163
    %165 = vdwg.mxu0
    %166 = vmatpush.bf16.msra.mxu0 %v135
    %167 = vmatpush.bf16.msra.mxu0 %v133
    %168 = vmatpush.bf16.msra.mxu0 %v131
    %169 = vmatpush.bf16.msra.mxu0 %v129
    %170 = vmatpush.bf16.msra.mxu0 %v127
    %171 = vmatpush.bf16.msra.mxu0 %v125
    %172 = vmatpush.bf16.msra.mxu0 %v123
    %173 = vmatpush.bf16.msra.mxu0 %v121
    %174 = vmatmul.bf16.gmra.mxu0 %v70
    %v175 = vpop.f32.mrf.mxu0
    %v176 = vadd.f32 %v63, %v175
    %v177 = vpop.f32.mrf.mxu0
    %v178 = vadd.f32 %v63, %v177
    %179 = vdwg.mxu0
    %v180 = vmax.f32 %v176, 0.0
    %v181 = vmax.f32 %v178, 0.0
    %v182 = vpack.c.bf16 %v164, %v162
    %v183 = vld [vmem:[%s3] sm:$0xf]
    %v184 = vld [vmem:[%s3 + $0x4] sm:$0xf]
    %v185 = vld [vmem:[%s3 + $0x8] sm:$0xf]
    %v186 = vld [vmem:[%s3 + $0xc] sm:$0xf]
    %v187 = vld [vmem:[%s3 + $0x10] sm:$0xf]
    %v188 = vld [vmem:[%s3 + $0x14] sm:$0xf]
    %v189 = vld [vmem:[%s3 + $0x18] sm:$0xf]
    %v190 = vld [vmem:[%s3 + $0x1c] sm:$0xf]
    %v191 = vld [vmem:[%s3 + $0x20] sm:$0xf]
    %v192 = vld [vmem:[%s3 + $0x24] sm:$0xf]
    %v193 = vld [vmem:[%s3 + $0x28] sm:$0xf]
    %v194 = vld [vmem:[%s3 + $0x2c] sm:$0xf]
    %v195 = vld [vmem:[%s3 + $0x30] sm:$0xf]
    %v196 = vld [vmem:[%s3 + $0x34] sm:$0xf]
    %v197 = vld [vmem:[%s3 + $0x38] sm:$0xf]
    %v198 = vld [vmem:[%s3 + $0x3c] sm:$0xf]
    %v215 = vunpack.c.l.b16 %v183
    %v216 = vunpack.c.l.b16 %v184
    %v217 = vunpack.c.l.b16 %v185
    %v218 = vunpack.c.l.b16 %v186
    %v219 = vunpack.c.l.b16 %v187
    %v220 = vunpack.c.l.b16 %v188
    %v221 = vunpack.c.l.b16 %v189
    %v222 = vunpack.c.l.b16 %v190
    %v223 = vunpack.c.l.b16 %v191
    %v224 = vunpack.c.l.b16 %v192
    %v225 = vunpack.c.l.b16 %v193
    %v226 = vunpack.c.l.b16 %v194
    %v227 = vunpack.c.l.b16 %v195
    %v228 = vunpack.c.l.b16 %v196
    %v229 = vunpack.c.l.b16 %v197
    %v230 = vunpack.c.l.b16 %v198
    %v231 = vpack.c.b16 %v216, %v215
    %v232 = vpack.c.b16 %v218, %v217
    %v233 = vpack.c.b16 %v220, %v219
    %v234 = vpack.c.b16 %v222, %v221
    %v235 = vpack.c.b16 %v224, %v223
    %v236 = vpack.c.b16 %v226, %v225
    %v237 = vpack.c.b16 %v228, %v227
    %v238 = vpack.c.b16 %v230, %v229
    %247 = vmatpush.bf16.msra.mxu0 %v238
    %248 = vmatpush.bf16.msra.mxu0 %v237
    %249 = vmatpush.bf16.msra.mxu0 %v236
    %250 = vmatpush.bf16.msra.mxu0 %v235
    %251 = vmatpush.bf16.msra.mxu0 %v234
    %252 = vmatpush.bf16.msra.mxu0 %v233
    %253 = vmatpush.bf16.msra.mxu0 %v232
    %254 = vmatpush.bf16.msra.mxu0 %v231
    %255 = vmatmul.bf16.gmra.mxu0 %v182
    %v256 = vpop.f32.mrf.mxu0
    %v257 = vadd.f32 0.0, %v256
    %v258 = vpop.f32.mrf.mxu0
    %v259 = vadd.f32 0.0, %v258
    %260 = vdwg.mxu0
    %v261 = vmul.f32 %v257, %v257
    %v262 = vmul.f32 %v259, %v259
    %vm263 = vcmask 130048
    %v264 = vsel %vm263, %v261, 0.0
    %265 = vadd.xlane.f32.xlu0 %v264
    %v266 = vpop.xlane.xlu0 %265
    %v267 = vsel %vm263, %v262, 0.0
    %268 = vadd.xlane.f32.xlu0 %v267
    %v269 = vpop.xlane.xlu0 %268
    %v270 = vmul.f32 %v162, %v162
    %v271 = vmul.f32 %v164, %v164
    %272 = vadd.xlane.f32.xlu0 %v270
    %v273 = vpop.xlane.xlu0 %272
    %274 = vadd.xlane.f32.xlu0 %v271
    %v275 = vpop.xlane.xlu0 %274
    %v276 = vsub.f32 %v266, %v273
    %v277 = vsub.f32 %v269, %v275
    %v278 = vmul.f32 %v276, 0.5
    %v279 = vmul.f32 %v277, 0.5
    %v280 = vunpack.c.l.bf16 %v42
    %v281 = vunpack.c.l.bf16 %v43
    %v282 = vpack.c.bf16 %v181, %v180
    %v283 = vld [vmem:[%s4] sm:$0xf]
    %v284 = vld [vmem:[%s4 + $0x4] sm:$0xf]
    %v285 = vld [vmem:[%s4 + $0x8] sm:$0xf]
    %v286 = vld [vmem:[%s4 + $0xc] sm:$0xf]
    %v287 = vld [vmem:[%s4 + $0x10] sm:$0xf]
    %v288 = vld [vmem:[%s4 + $0x14] sm:$0xf]
    %v289 = vld [vmem:[%s4 + $0x18] sm:$0xf]
    %v290 = vld [vmem:[%s4 + $0x1c] sm:$0xf]
    %v291 = vld [vmem:[%s4 + $0x20] sm:$0xf]
    %v292 = vld [vmem:[%s4 + $0x24] sm:$0xf]
    %v293 = vld [vmem:[%s4 + $0x28] sm:$0xf]
    %v294 = vld [vmem:[%s4 + $0x2c] sm:$0xf]
    %v295 = vld [vmem:[%s4 + $0x30] sm:$0xf]
    %v296 = vld [vmem:[%s4 + $0x34] sm:$0xf]
    %v297 = vld [vmem:[%s4 + $0x38] sm:$0xf]
    %v298 = vld [vmem:[%s4 + $0x3c] sm:$0xf]
    %v299 = vld [vmem:[%s5] sm:$0x1]
    %v301 = vperm.slane %v299, 0
    %v319 = vunpack.c.l.b16 %v283
    %v320 = vunpack.c.l.b16 %v284
    %v321 = vunpack.c.l.b16 %v285
    %v322 = vunpack.c.l.b16 %v286
    %v323 = vunpack.c.l.b16 %v287
    %v324 = vunpack.c.l.b16 %v288
    %v325 = vunpack.c.l.b16 %v289
    %v326 = vunpack.c.l.b16 %v290
    %v327 = vunpack.c.l.b16 %v291
    %v328 = vunpack.c.l.b16 %v292
    %v329 = vunpack.c.l.b16 %v293
    %v330 = vunpack.c.l.b16 %v294
    %v331 = vunpack.c.l.b16 %v295
    %v332 = vunpack.c.l.b16 %v296
    %v333 = vunpack.c.l.b16 %v297
    %v334 = vunpack.c.l.b16 %v298
    %v335 = vpack.c.b16 %v320, %v319
    %v336 = vpack.c.b16 %v322, %v321
    %v337 = vpack.c.b16 %v324, %v323
    %v338 = vpack.c.b16 %v326, %v325
    %v339 = vpack.c.b16 %v328, %v327
    %v340 = vpack.c.b16 %v330, %v329
    %v341 = vpack.c.b16 %v332, %v331
    %v342 = vpack.c.b16 %v334, %v333
    %351 = vmatpush.bf16.msra.mxu0 %v342
    %352 = vmatpush.bf16.msra.mxu0 %v341
    %353 = vmatpush.bf16.msra.mxu0 %v340
    %354 = vmatpush.bf16.msra.mxu0 %v339
    %355 = vmatpush.bf16.msra.mxu0 %v338
    %356 = vmatpush.bf16.msra.mxu0 %v337
    %357 = vmatpush.bf16.msra.mxu0 %v336
    %358 = vmatpush.bf16.msra.mxu0 %v335
    %359 = vmatmul.bf16.gmra.mxu0 %v282
    %v360 = vpop.f32.mrf.mxu0
    %v361 = vadd.f32 %v301, %v360
    %v362 = vpop.f32.mrf.mxu0
    %v363 = vadd.f32 %v301, %v362
    %364 = vdwg.mxu0
    %v365 = vmax.f32 %v361, 0.0
    %v366 = vmax.f32 %v363, 0.0
    %v367 = vld [vmem:[%s6] sm:$0x1]
    %v369 = vperm.slane %v367, 0
    %v371 = vmul.f32 %v365, %v369
    %v372 = vmul.f32 %v366, %v369
    %373 = vadd.xlane.f32.xlu0 %v371
    %v374 = vpop.xlane.xlu0 %373
    %375 = vadd.xlane.f32.xlu0 %v372
    %v376 = vpop.xlane.xlu0 %375
    %v377 = vadd.f32 %v280, %v278
    %v378 = vadd.f32 %v281, %v279
    %v379 = vadd.f32 %v377, %v374
    %v380 = vadd.f32 %v378, %v376
    %v381 = vxor.u32 %v379, 2147483648
    %v382 = vxor.u32 %v380, 2147483648
    %v383 = vmul.f32 %v381, 1.442695
    %v384 = vpow.pop %v383
    %v385 = vmul.f32 %v382, 1.442695
    %v386 = vpow.pop %v385
    %v387 = vadd.f32 %v384, 1.0
    %v388 = vadd.f32 %v386, 1.0
    %v389 = vrcp.pop %v387
    %v390 = vmul.f32 %v387, %v389
    %v391 = vsub.f32 1.0, %v390
    %v392 = vmul.f32 %v389, %v391
    %v393 = vadd.f32 %v389, %v392
    %vm394 = vweird.f32 %v387
    %vm395 = vweird.f32 %v389
    %vm396 = vmor %vm394, %vm395
    %v397 = vsel %vm396, %v389, %v393
    %v398 = vand.u32 2147483647, %v387
    %vm399 = vcmp.eq.f32.partialorder %v398, 8.507059e+37
    %v400 = vand.u32 %v387, 2147483648
    %v401 = vor.u32 1.1754944e-38, %v400
    %v402 = vsel %vm399, %v401, %v397
    %v403 = vmul.f32 1.0, %v402
    %v404 = vrcp.pop %v388
    %v405 = vmul.f32 %v388, %v404
    %v406 = vsub.f32 1.0, %v405
    %v407 = vmul.f32 %v404, %v406
    %v408 = vadd.f32 %v404, %v407
    %vm409 = vweird.f32 %v388
    %vm410 = vweird.f32 %v404
    %vm411 = vmor %vm409, %vm410
    %v412 = vsel %vm411, %v404, %v408
    %v413 = vand.u32 2147483647, %v388
    %vm414 = vcmp.eq.f32.partialorder %v413, 8.507059e+37
    %v415 = vand.u32 %v388, 2147483648
    %v416 = vor.u32 1.1754944e-38, %v415
    %v417 = vsel %vm414, %v416, %v412
    %v418 = vmul.f32 1.0, %v417
    %421 = vrot.lane.b32.xlu0 %v403, 64
    %v422 = vpop.permute.xlu0 %421
    %423 = vrot.lane.b32.xlu0 %v418, 64
    %v424 = vpop.permute.xlu0 %423
    %vm427 = vcmask 7168
    %428 = vst.msk [vmem:[%s7] sm:$0xff] %vm427, %v422
    %429 = vst.msk [vmem:[%s7 + $0x8] sm:$0xff] %vm427, %v424
    // Predicated region
    $region34: #{tpu_custom_call.1} parent=1 // pred_check
      _
    $region35: #{tpu_custom_call.1} parent=1 // pred_check_branch
      %431 = sbr.rel (0) target = $region37
    $region36: #{tpu_custom_call.1} parent=1 // pred_region
      _
    $region37: #{tpu_custom_call.1} parent=1 // pred_fallthru
      _
    // Predicated region
    $region38: #{tpu_custom_call.1} parent=1 // pred_check
      _
    $region39: #{tpu_custom_call.1} parent=1 // pred_check_branch
      %433 = sbr.rel (0) target = $region41
    $region40: #{tpu_custom_call.1} parent=1 // pred_region
      _
    $region41: #{tpu_custom_call.1} parent=1 // pred_fallthru
      _
    %434 = vsyncpa [#allocation3], 1

</llo_original>
